<compile_context>
chip_gen: v7x
topology: tpu7x:2x2x1
jax: 0.10.0
libtpu: 0.0.40
codegen_flags: <defaults>
</compile_context>

<pallas_src>
import functools

import jax
import jax.numpy as jnp
from jax.experimental import pallas as pl
from jax.experimental.pallas import tpu as pltpu


def _project3d_kernel(p_ref, pts_ref, out_ref):
    # p_ref:   SMEM (B, 12)            folded projection rows (scalar prefetch)
    # pts_ref: VMEM (1, 4, TR, 128)    homogeneous points, sublane-dense
    # out_ref: VMEM (1, 2, TR, 128)    normalized pixel coords (x row, y row)
    b = pl.program_id(0)

    x = pts_ref[0, 0]                  # (TR, 128)
    y = pts_ref[0, 1]
    z = pts_ref[0, 2]
    w = pts_ref[0, 3]

    def proj_row(r):
        # Scalar (SMEM) -> vector splat multiply-adds on the VPU; no MXU/XLU.
        return (p_ref[b, r * 4 + 0] * x +
                p_ref[b, r * 4 + 1] * y +
                p_ref[b, r * 4 + 2] * z +
                p_ref[b, r * 4 + 3] * w)                  # (TR, 128)

    cam_x = proj_row(0)                # already scaled by 2/(W-1)
    cam_y = proj_row(1)                # already scaled by 2/(H-1)
    cam_z = proj_row(2)                # unscaled depth

    inv_z = pl.reciprocal(jnp.maximum(cam_z, 1e-4))       # .clamp(min=0.0001)
    out_ref[0, 0] = cam_x * inv_z - 1.0
    out_ref[0, 1] = cam_y * inv_z - 1.0


def _pick_tile_rows(rows, target_rows):
    """Choose the sublane-row tile.  Returns (tile_rows, padded_rows)."""
    if rows <= target_rows:
        return rows, rows                       # single full-extent tile
    # Tiles smaller than the array must have sublane dim % 8 == 0.
    best = 0
    d = 1
    while d * d <= rows:
        if rows % d == 0:
            for cand in (d, rows // d):
                if cand <= target_rows and cand % 8 == 0:
                    best = max(best, cand)
        d += 1
    if best >= max(8, target_rows // 16):
        return best, rows                       # exact tiling, no padding
    # Pathological row count: accept a small pad instead of tiny tiles.
    tile = max(8, (target_rows // 8) * 8)
    return tile, pl.cdiv(rows, tile) * tile


def project3d(points, K, T, *, height, width, tn=65536):
    """points: (B, 4, H*W); K, T: (B, 4, 4) -> (B, H, W, 2)."""
    B, four, N = points.shape
    assert four == 4 and N == height * width

    # Fold K@T, the :3 row slice, the 1/(W-1), 1/(H-1) scaling and the "*2"
    # of the output affine into one per-batch (3, 4) matrix (tiny XLA matmul).
    P = jnp.matmul(K.astype(jnp.float32), T.astype(jnp.float32))[:, :3, :]
    scale = jnp.array([2.0 / (width - 1), 2.0 / (height - 1), 1.0], jnp.float32)
    P = (P * scale[None, :, None]).reshape(B, 12)          # -> SMEM via prefetch

    # Sublane-dense layout: N points become (rows, 128) slabs.
    rows = pl.cdiv(N, 128)
    target_rows = max(1, int(tn) // 128)
    tile_rows, rows_pad = _pick_tile_rows(rows, target_rows)
    n_pad = rows_pad * 128

    pts = points.astype(jnp.float32)
    if n_pad != N:
        # Rare fallback (N % 128 != 0 or prime-ish row count).  Padded columns
        # have z=0 -> clamped to 1e-4 -> finite junk, sliced off below.
        pts = jnp.pad(pts, ((0, 0), (0, 0), (0, n_pad - N)))
    pts4 = pts.reshape(B, 4, rows_pad, 128)

    out4 = pl.pallas_call(
        _project3d_kernel,
        out_shape=jax.ShapeDtypeStruct((B, 2, rows_pad, 128), jnp.float32),
        grid_spec=pltpu.PrefetchScalarGridSpec(
            num_scalar_prefetch=1,                         # P -> SMEM
            grid=(B, rows_pad // tile_rows),
            in_specs=[
                pl.BlockSpec((1, 4, tile_rows, 128),
                             lambda b, n, p: (b, 0, n, 0)),
            ],
            out_specs=pl.BlockSpec((1, 2, tile_rows, 128),
                                   lambda b, n, p: (b, 0, n, 0)),
        ),
        compiler_params=pltpu.CompilerParams(
            dimension_semantics=("parallel", "parallel")),
    )(P, pts4)

    # Glue (XLA): (B, 2, rows_pad, 128) -> (B, 2, H, W) -> (B, H, W, 2),
    # matching the PyTorch .view(...).permute(0, 2, 3, 1).  If the consumer
    # accepts channel-first coordinates, drop the transpose to save one
    # read+write pass over the 8 B/point output.
    pix = out4.reshape(B, 2, n_pad)[:, :, :N].reshape(B, 2, height, width)
    return jnp.transpose(pix, (0, 2, 3, 1))


def _project3d_ref(points, K, T, *, height, width):
    # Pure-JAX reference mirroring the PyTorch forward exactly.
    P = jnp.matmul(K, T)[:, :3, :]
    cam = jnp.matmul(P, points)
    pix = cam[:, :2, :] / jnp.maximum(cam[:, 2:3, :], 1e-4)
    pix = pix.reshape(points.shape[0], 2, height, width)
    pix = jnp.transpose(pix, (0, 2, 3, 1))
    pix = pix.at[..., 0].divide(width - 1)
    pix = pix.at[..., 1].divide(height - 1)
    return (pix - 0.5) * 2.0


if __name__ == "__main__":
    B, H, W = 2, 16, 16
    N = H * W
    key = jax.random.PRNGKey(0)
    k1, k2 = jax.random.split(key, 2)

    # Homogeneous 3D points: random xyz, pushed well in front of the camera.
    xyz = jax.random.normal(k1, (B, 3, N), dtype=jnp.float32)
    xyz = xyz.at[:, 2, :].add(5.0)
    points = jnp.concatenate([xyz, jnp.ones((B, 1, N), jnp.float32)], axis=1)

    # Deterministic intrinsics K (4x4) and pose T (4x4).
    fx, fy, cx, cy = 0.9 * W, 0.9 * H, 0.5 * W, 0.5 * H
    K_single = jnp.array(
        [[fx, 0.0, cx, 0.0],
         [0.0, fy, cy, 0.0],
         [0.0, 0.0, 1.0, 0.0],
         [0.0, 0.0, 0.0, 1.0]], dtype=jnp.float32)
    K = jnp.broadcast_to(K_single, (B, 4, 4))

    eye = jnp.broadcast_to(jnp.eye(4, dtype=jnp.float32), (B, 4, 4))
    trans = 0.1 * jax.random.normal(k2, (B, 3), dtype=jnp.float32)
    T = eye.at[:, :3, 3].set(trans)

    proj = jax.jit(functools.partial(project3d, height=H, width=W, tn=65536))
    out = jax.block_until_ready(proj(points, K, T))

    ref = _project3d_ref(points, K, T, height=H, width=W)
    assert out.shape == (B, H, W, 2)
    assert jnp.allclose(out, ref, atol=1e-5, rtol=1e-5), \
        float(jnp.max(jnp.abs(out - ref)))
    print("KERNEL_OK")
</pallas_src>

<mosaic_0001>
module attributes {stable_mosaic.version = 11 : i64} {
  func.func @_project3d_kernel(%arg0: i32, %arg1: i32, %arg2: memref<2x12xf32, #tpu.memory_space<smem>>, %arg3: memref<1x4x2x128xf32, #tpu.memory_space<vmem>>, %arg4: memref<1x2x2x128xf32, #tpu.memory_space<vmem>>) attributes {dimension_semantics = [#tpu.dimension_semantics<parallel>, #tpu.dimension_semantics<parallel>], iteration_bounds = array<i64: 2, 1>, scalar_prefetch = 1 : i64, scratch_operands = 0 : i64, tpu.core_type = #tpu.core_type<tc>, window_params = [{transform_indices = @transform_0, window_bounds = array<i64: 1, 4, 2, 128>}, {transform_indices = @transform_1, window_bounds = array<i64: 1, 2, 2, 128>}]} {
    %c0 = arith.constant 0 : index
    %c0_0 = arith.constant 0 : index
    %c0_1 = arith.constant 0 : index
    %c0_2 = arith.constant 0 : index
    %0 = vector.load %arg3[%c0, %c0_0, %c0_1, %c0_2] : memref<1x4x2x128xf32, #tpu.memory_space<vmem>>, vector<1x1x2x128xf32>
    %1 = vector.shape_cast %0 : vector<1x1x2x128xf32> to vector<2x128xf32>
    %c0_3 = arith.constant 0 : index
    %c1 = arith.constant 1 : index
    %c0_4 = arith.constant 0 : index
    %c0_5 = arith.constant 0 : index
    %2 = vector.load %arg3[%c0_3, %c1, %c0_4, %c0_5] : memref<1x4x2x128xf32, #tpu.memory_space<vmem>>, vector<1x1x2x128xf32>
    %3 = vector.shape_cast %2 : vector<1x1x2x128xf32> to vector<2x128xf32>
    %c0_6 = arith.constant 0 : index
    %c2 = arith.constant 2 : index
    %c0_7 = arith.constant 0 : index
    %c0_8 = arith.constant 0 : index
    %4 = vector.load %arg3[%c0_6, %c2, %c0_7, %c0_8] : memref<1x4x2x128xf32, #tpu.memory_space<vmem>>, vector<1x1x2x128xf32>
    %5 = vector.shape_cast %4 : vector<1x1x2x128xf32> to vector<2x128xf32>
    %c0_9 = arith.constant 0 : index
    %c3 = arith.constant 3 : index
    %c0_10 = arith.constant 0 : index
    %c0_11 = arith.constant 0 : index
    %6 = vector.load %arg3[%c0_9, %c3, %c0_10, %c0_11] : memref<1x4x2x128xf32, #tpu.memory_space<vmem>>, vector<1x1x2x128xf32>
    %7 = vector.shape_cast %6 : vector<1x1x2x128xf32> to vector<2x128xf32>
    %8 = arith.index_cast %arg0 : i32 to index
    %c0_12 = arith.constant 0 : index
    %9 = memref.load %arg2[%8, %c0_12] : memref<2x12xf32, #tpu.memory_space<smem>>
    %10 = vector.broadcast %9 : f32 to vector<2x128xf32>
    %11 = arith.mulf %10, %1 : vector<2x128xf32>
    %12 = arith.index_cast %arg0 : i32 to index
    %c1_13 = arith.constant 1 : index
    %13 = memref.load %arg2[%12, %c1_13] : memref<2x12xf32, #tpu.memory_space<smem>>
    %14 = vector.broadcast %13 : f32 to vector<2x128xf32>
    %15 = arith.mulf %14, %3 : vector<2x128xf32>
    %16 = arith.addf %11, %15 : vector<2x128xf32>
    %17 = arith.index_cast %arg0 : i32 to index
    %c2_14 = arith.constant 2 : index
    %18 = memref.load %arg2[%17, %c2_14] : memref<2x12xf32, #tpu.memory_space<smem>>
    %19 = vector.broadcast %18 : f32 to vector<2x128xf32>
    %20 = arith.mulf %19, %5 : vector<2x128xf32>
    %21 = arith.addf %16, %20 : vector<2x128xf32>
    %22 = arith.index_cast %arg0 : i32 to index
    %c3_15 = arith.constant 3 : index
    %23 = memref.load %arg2[%22, %c3_15] : memref<2x12xf32, #tpu.memory_space<smem>>
    %24 = vector.broadcast %23 : f32 to vector<2x128xf32>
    %25 = arith.mulf %24, %7 : vector<2x128xf32>
    %26 = arith.addf %21, %25 : vector<2x128xf32>
    %27 = arith.index_cast %arg0 : i32 to index
    %c4 = arith.constant 4 : index
    %28 = memref.load %arg2[%27, %c4] : memref<2x12xf32, #tpu.memory_space<smem>>
    %29 = vector.broadcast %28 : f32 to vector<2x128xf32>
    %30 = arith.mulf %29, %1 : vector<2x128xf32>
    %31 = arith.index_cast %arg0 : i32 to index
    %c5 = arith.constant 5 : index
    %32 = memref.load %arg2[%31, %c5] : memref<2x12xf32, #tpu.memory_space<smem>>
    %33 = vector.broadcast %32 : f32 to vector<2x128xf32>
    %34 = arith.mulf %33, %3 : vector<2x128xf32>
    %35 = arith.addf %30, %34 : vector<2x128xf32>
    %36 = arith.index_cast %arg0 : i32 to index
    %c6 = arith.constant 6 : index
    %37 = memref.load %arg2[%36, %c6] : memref<2x12xf32, #tpu.memory_space<smem>>
    %38 = vector.broadcast %37 : f32 to vector<2x128xf32>
    %39 = arith.mulf %38, %5 : vector<2x128xf32>
    %40 = arith.addf %35, %39 : vector<2x128xf32>
    %41 = arith.index_cast %arg0 : i32 to index
    %c7 = arith.constant 7 : index
    %42 = memref.load %arg2[%41, %c7] : memref<2x12xf32, #tpu.memory_space<smem>>
    %43 = vector.broadcast %42 : f32 to vector<2x128xf32>
    %44 = arith.mulf %43, %7 : vector<2x128xf32>
    %45 = arith.addf %40, %44 : vector<2x128xf32>
    %46 = arith.index_cast %arg0 : i32 to index
    %c8 = arith.constant 8 : index
    %47 = memref.load %arg2[%46, %c8] : memref<2x12xf32, #tpu.memory_space<smem>>
    %48 = vector.broadcast %47 : f32 to vector<2x128xf32>
    %49 = arith.mulf %48, %1 : vector<2x128xf32>
    %50 = arith.index_cast %arg0 : i32 to index
    %c9 = arith.constant 9 : index
    %51 = memref.load %arg2[%50, %c9] : memref<2x12xf32, #tpu.memory_space<smem>>
    %52 = vector.broadcast %51 : f32 to vector<2x128xf32>
    %53 = arith.mulf %52, %3 : vector<2x128xf32>
    %54 = arith.addf %49, %53 : vector<2x128xf32>
    %55 = arith.index_cast %arg0 : i32 to index
    %c10 = arith.constant 10 : index
    %56 = memref.load %arg2[%55, %c10] : memref<2x12xf32, #tpu.memory_space<smem>>
    %57 = vector.broadcast %56 : f32 to vector<2x128xf32>
    %58 = arith.mulf %57, %5 : vector<2x128xf32>
    %59 = arith.addf %54, %58 : vector<2x128xf32>
    %60 = arith.index_cast %arg0 : i32 to index
    %c11 = arith.constant 11 : index
    %61 = memref.load %arg2[%60, %c11] : memref<2x12xf32, #tpu.memory_space<smem>>
    %62 = vector.broadcast %61 : f32 to vector<2x128xf32>
    %63 = arith.mulf %62, %7 : vector<2x128xf32>
    %64 = arith.addf %59, %63 : vector<2x128xf32>
    %cst = arith.constant 9.99999974E-5 : f32
    %65 = vector.broadcast %cst : f32 to vector<2x128xf32>
    %66 = arith.maximumf %64, %65 : vector<2x128xf32>
    %67 = tpu.reciprocal %66 : vector<2x128xf32> -> vector<2x128xf32>
    %68 = arith.mulf %26, %67 : vector<2x128xf32>
    %cst_16 = arith.constant 1.000000e+00 : f32
    %69 = vector.broadcast %cst_16 : f32 to vector<2x128xf32>
    %70 = arith.subf %68, %69 : vector<2x128xf32>
    %c0_17 = arith.constant 0 : index
    %c0_18 = arith.constant 0 : index
    %c0_19 = arith.constant 0 : index
    %c0_20 = arith.constant 0 : index
    %71 = vector.load %arg4[%c0_17, %c0_18, %c0_19, %c0_20] : memref<1x2x2x128xf32, #tpu.memory_space<vmem>>, vector<1x1x2x128xf32>
    %72 = vector.shape_cast %71 : vector<1x1x2x128xf32> to vector<2x128xf32>
    %73 = vector.shape_cast %70 : vector<2x128xf32> to vector<1x1x2x128xf32>
    tpu.vector_store %arg4[%c0_17, %c0_18, %c0_19, %c0_20], %73 {strides = array<i32>} : memref<1x2x2x128xf32, #tpu.memory_space<vmem>>, vector<1x1x2x128xf32>,
    %74 = arith.mulf %45, %67 : vector<2x128xf32>
    %cst_21 = arith.constant 1.000000e+00 : f32
    %75 = vector.broadcast %cst_21 : f32 to vector<2x128xf32>
    %76 = arith.subf %74, %75 : vector<2x128xf32>
    %c0_22 = arith.constant 0 : index
    %c1_23 = arith.constant 1 : index
    %c0_24 = arith.constant 0 : index
    %c0_25 = arith.constant 0 : index
    %77 = vector.load %arg4[%c0_22, %c1_23, %c0_24, %c0_25] : memref<1x2x2x128xf32, #tpu.memory_space<vmem>>, vector<1x1x2x128xf32>
    %78 = vector.shape_cast %77 : vector<1x1x2x128xf32> to vector<2x128xf32>
    %79 = vector.shape_cast %76 : vector<2x128xf32> to vector<1x1x2x128xf32>
    tpu.vector_store %arg4[%c0_22, %c1_23, %c0_24, %c0_25], %79 {strides = array<i32>} : memref<1x2x2x128xf32, #tpu.memory_space<vmem>>, vector<1x1x2x128xf32>,
    return
  }
  func.func @transform_0(%arg0: i32, %arg1: i32, %arg2: memref<2x12xf32, #tpu.memory_space<smem>>) -> (i32, i32, i32, i32) {
    %c0_i32 = arith.constant 0 : i32
    %c0_i32_0 = arith.constant 0 : i32
    %c0_i32_1 = arith.constant 0 : i32
    return %arg0, %c0_i32, %arg1, %c0_i32_0 : i32, i32, i32, i32
  }
  func.func @transform_1(%arg0: i32, %arg1: i32, %arg2: memref<2x12xf32, #tpu.memory_space<smem>>) -> (i32, i32, i32, i32) {
    %c0_i32 = arith.constant 0 : i32
    %c0_i32_0 = arith.constant 0 : i32
    %c0_i32_1 = arith.constant 0 : i32
    return %arg0, %c0_i32, %arg1, %c0_i32_0 : i32, i32, i32, i32
  }
}

</mosaic_0001>

<llo_original>
// kernel: project3d.1
$region0: #{project3d.1}
  #allocation0 [shape = 'u32[]', space=smem, size = 0x4, offset = 0x4, fixed_abs, tag = 'smem constant byte address 0x4 - core index']
  #allocation1 [shape = 'u32[144,128]{1,0:T(1,128)}', space=vmem, size = 0x12000, scoped, tag = 'internal scratch']
  #allocation2 [shape = 's32[1]{0}', space=sflag, size = 0x4, scoped, tag = 'scoped memory for project3d.1']
  #allocation3 [shape = 'u8[1024]{0}', space=smem, size = 0x400, scoped, tag = 'prefetched SMEM operand 0']
  %s0 = inlined_call_operand.vmem [shape: f32[2,12], index: 0, kind: input, shape index: {}]
  %s1 = inlined_call_operand.vmem [shape: f32[2,4,2,128], index: 1, kind: input, shape index: {}]
  %s2 = inlined_call_operand.vmem [shape: f32[2,2,2,128], index: 2, kind: output, shape index: {}]
  %s3 = sld [smem:[#allocation0]]
  $region37: #{project3d.1} parent=0
    _
  %s5 = ssub.s32 1, %s3
  %s6 = scalar_select 0, %s5, %s3
  %s7 = sshll.u32 %s0, 4
  %s8 = int_to_ptr.vmem [resolvable:$true] %s7
  %10 = dma.vmem_to_smem %s8, 32, [#allocation3], [#allocation2]
  %11 = dma.done [#allocation2], 32
  %12 = sfence
  loop: start=0, step=1, limit=4
  $region2: #{project3d.1} parent=0 // loop_pre_header
    _
  $region3: #{project3d.1} parent=0 // loop_header
    %s14 = sphi 0, %s18
    %p15 = scmp.ge.s32.totalorder %s14, 4
    %s21 = sphi 0, %s33
    %s22 = sphi 0, %s29
    %s23 = sphi 0, %s21
    %s24 = sphi 0, %s22
    %s25 = sphi 0, %s23
    %s26 = sphi 0, %s24
    %s38 = sphi 0, %s40
    %s41 = sphi 0, %s38
    %s42 = sphi 0, %s41
    %s58 = sphi 0, %s42
    %s66 = sphi 0, %s68
    %s69 = sphi 0, %s66
    %s70 = sphi 0, %s69
    %s86 = sphi 0, %s70
  $region4: #{project3d.1} parent=0 // loop_header_branch
    %17 = sbr.rel (%p15) target = $region8
  $region5: #{project3d.1} parent=0 // loop_body
    %s19 = ssub.s32 %s14, 1
    %s20 = ssub.s32 %s14, 2
    %s27 = sadd.s32 1, %s22
    %p28 = scmp.ge.s32.totalorder %s27, 1
    %s29 = scalar_select %p28, 0, %s27
    %s30 = sadd.s32 1, %s21
    %s31 = scalar_select %p28, %s30, %s21
    %p32 = scmp.ge.s32.totalorder %s31, 2
    %s33 = scalar_select %p32, 0, %s31
    %s34 = ssub.s32 %s21, %s33
    %s35 = ssub.s32 %s22, %s29
    %s36 = sor.u32 %s34, %s35
    %p37 = scmp.eq.s32.totalorder %s36, 0
    %s39 = sadd.s32 %s38, 1
    %s40 = scalar_select %p37, %s38, %s39
    %p43 = pneg %p37
    %p44 = scmp.eq.s32.totalorder %s14, 1
    %p45 = por %p43, %p44
    %p46 = scmp.ne.s32.totalorder %s38, %s41
    %p47 = scmp.eq.s32.totalorder %s14, 0
    %p48 = por %p46, %p47
    %p49 = scmp.ne.s32.totalorder %s38, %s41
    %p50 = scmp.eq.s32.totalorder %s19, 1
    %p51 = por %p49, %p50
    %p52 = scmp.ne.s32.totalorder %s41, %s42
    %p53 = scmp.eq.s32.totalorder %s19, 0
    %p54 = por %p52, %p53
    %p55 = scmp.ne.s32.totalorder %s41, %s42
    %p56 = scmp.eq.s32.totalorder %s20, 1
    %p57 = por %p55, %p56
    %p59 = scmp.ne.s32.totalorder %s42, %s58
    %p60 = scmp.eq.s32.totalorder %s20, 0
    %p61 = por %p59, %p60
    %s62 = ssub.s32 %s21, %s33
    %s63 = ssub.s32 %s22, %s29
    %s64 = sor.u32 %s62, %s63
    %p65 = scmp.eq.s32.totalorder %s64, 0
    %s67 = sadd.s32 %s66, 1
    %s68 = scalar_select %p65, %s66, %s67
    %p71 = pneg %p65
    %p72 = scmp.eq.s32.totalorder %s14, 1
    %p73 = por %p71, %p72
    %p74 = scmp.ne.s32.totalorder %s66, %s69
    %p75 = scmp.eq.s32.totalorder %s14, 0
    %p76 = por %p74, %p75
    %p77 = scmp.ne.s32.totalorder %s66, %s69
    %p78 = scmp.eq.s32.totalorder %s19, 1
    %p79 = por %p77, %p78
    %p80 = scmp.ne.s32.totalorder %s69, %s70
    %p81 = scmp.eq.s32.totalorder %s19, 0
    %p82 = por %p80, %p81
    %p83 = scmp.ne.s32.totalorder %s69, %s70
    %p84 = scmp.eq.s32.totalorder %s20, 1
    %p85 = por %p83, %p84
    %p87 = scmp.ne.s32.totalorder %s70, %s86
    %p88 = scmp.eq.s32.totalorder %s20, 0
    %p89 = por %p87, %p88
    %p90 = scmp.le.s32.totalorder 1, %s14
    %p91 = scmp.lt.s32.totalorder %s14, 3
    %p92 = pnand %p90, %p91
    %p93 = pneg %p92
    // Predicated region
    $region9: #{project3d.1} parent=5 // pred_check
      _
    $region10: #{project3d.1} parent=5 // pred_check_branch
      %95 = sbr.rel (%p92) target = $region12
    $region11: #{project3d.1} parent=5 // pred_region
      %s96 = ssub.s32 %s14, 1
    $region12: #{project3d.1} parent=5 // pred_fallthru
      _
    %p97 = scmp.lt.s32.totalorder %s14, 2
    // Predicated region
    $region13: #{project3d.1} parent=5 // pred_check
      %p98 = pneg %p97
    $region14: #{project3d.1} parent=5 // pred_check_branch
      %100 = sbr.rel (%p98) target = $region16
    $region15: #{project3d.1} parent=5 // pred_region
      // Predicated region
      $region17: #{project3d.1} parent=15 // pred_check
        %p101 = pneg %p48
      $region18: #{project3d.1} parent=15 // pred_check_branch
        %103 = sbr.rel (%p101) target = $region20
      $region19: #{project3d.1} parent=15 // pred_region
        %p104 = scmp.lt.s32.totalorder %s21, 1
        %s105 = scalar_select %p104, %s21, 1
        %p106 = scmp.lt.s32.totalorder %s22, 0
        %s107 = scalar_select %p106, %s22, 0
        %s108 = smul.addr %s105, 4
        %s109 = sadd.s32 %s107, %s108
        %s110 = smul.addr %s109, 2
        %s111 = scalar_lea.vmem %s1, %s110
      $region20: #{project3d.1} parent=15 // pred_fallthru
        _
    $region16: #{project3d.1} parent=5 // pred_fallthru
      _
    %p112 = scmp.le.s32.totalorder 1, %s14
    %p113 = scmp.lt.s32.totalorder %s14, 3
    %p114 = pnand %p112, %p113
    %p115 = pneg %p114
    // Predicated region
    $region21: #{project3d.1} parent=5 // pred_check
      _
    $region22: #{project3d.1} parent=5 // pred_check_branch
      %117 = sbr.rel (%p114) target = $region24
    $region23: #{project3d.1} parent=5 // pred_region
      %s118 = ssub.s32 %s14, 1
      %p119 = scmp.lt.s32.totalorder %s23, 1
      %s120 = scalar_select %p119, %s23, 1
      %p121 = scmp.lt.s32.totalorder %s24, 0
      %s122 = scalar_select %p121, %s24, 0
      %s123 = smul.addr %s120, 4
      %s124 = sadd.s32 %s122, %s123
      %s125 = smul.addr %s124, 2
      %s126 = scalar_lea.vmem %s1, %s125
      %p127 = pneg %p54
      %p128 = pneg %p51
      %p129 = pneg %p82
      %p130 = pneg %p79
      %p131 = scmp.lt.s32.totalorder %s23, 1
      %s132 = scalar_select %p131, %s23, 1
      %p133 = scmp.lt.s32.totalorder %s24, 0
      %s134 = scalar_select %p133, %s24, 0
      %s135 = smul.addr %s132, 2
      %s136 = sadd.s32 %s134, %s135
      %s137 = smul.addr %s136, 2
      %s138 = scalar_lea.vmem %s2, %s137
      %p139 = scmp.lt.s32.totalorder %s23, 1
      %s140 = scalar_select %p139, %s23, 1
      %p141 = scmp.lt.s32.totalorder %s24, 0
      %s142 = scalar_select %p141, %s24, 0
      %s143 = smul.addr %s140, 4
      %s144 = sadd.s32 %s142, %s143
      %s145 = smul.addr %s144, 2
      %s146 = scalar_lea.vmem %s1, %s145
      %p147 = scmp.lt.s32.totalorder %s23, 1
      %s148 = scalar_select %p147, %s23, 1
      %p149 = scmp.lt.s32.totalorder %s24, 0
      %s150 = scalar_select %p149, %s24, 0
      %s151 = smul.addr %s148, 2
      %s152 = sadd.s32 %s150, %s151
      %s153 = smul.addr %s152, 2
      %s154 = scalar_lea.vmem %s2, %s153
      %v155 = vld [vmem:[%s146] sm:$0x3]
      %s156 = scalar_lea.vmem %s146, 2
      %v157 = vld [vmem:[%s156] sm:$0x3]
      %s158 = scalar_lea.vmem %s146, 4
      %v159 = vld [vmem:[%s158] sm:$0x3]
      %s160 = scalar_lea.vmem %s146, 6
      %v161 = vld [vmem:[%s160] sm:$0x3]
      %s162 = smul.u32 %s23, 128
      %s163 = sld [smem:[#allocation3 + %s162]]
      %v164 = vstv %s163
      %v165 = vmul.f32 %v164, %v155
      %s166 = sadd.s32 %s162, 1
      %s167 = sld [smem:[#allocation3 + %s166]]
      %v168 = vstv %s167
      %v169 = vmul.f32 %v168, %v157
      %v170 = vadd.f32 %v165, %v169
      %s171 = sadd.s32 %s162, 2
      %s172 = sld [smem:[#allocation3 + %s171]]
      %v173 = vstv %s172
      %v174 = vmul.f32 %v173, %v159
      %v175 = vadd.f32 %v170, %v174
      %s176 = sadd.s32 %s162, 3
      %s177 = sld [smem:[#allocation3 + %s176]]
      %v178 = vstv %s177
      %v179 = vmul.f32 %v178, %v161
      %v180 = vadd.f32 %v175, %v179
      %s181 = sadd.s32 %s162, 4
      %s182 = sld [smem:[#allocation3 + %s181]]
      %v183 = vstv %s182
      %v184 = vmul.f32 %v183, %v155
      %s185 = sadd.s32 %s162, 5
      %s186 = sld [smem:[#allocation3 + %s185]]
      %v187 = vstv %s186
      %v188 = vmul.f32 %v187, %v157
      %v189 = vadd.f32 %v184, %v188
      %s190 = sadd.s32 %s162, 6
      %s191 = sld [smem:[#allocation3 + %s190]]
      %v192 = vstv %s191
      %v193 = vmul.f32 %v192, %v159
      %v194 = vadd.f32 %v189, %v193
      %s195 = sadd.s32 %s162, 7
      %s196 = sld [smem:[#allocation3 + %s195]]
      %v197 = vstv %s196
      %v198 = vmul.f32 %v197, %v161
      %v199 = vadd.f32 %v194, %v198
      %s200 = sadd.s32 %s162, 8
      %s201 = sld [smem:[#allocation3 + %s200]]
      %v202 = vstv %s201
      %v203 = vmul.f32 %v202, %v155
      %s204 = sadd.s32 %s162, 9
      %s205 = sld [smem:[#allocation3 + %s204]]
      %v206 = vstv %s205
      %v207 = vmul.f32 %v206, %v157
      %v208 = vadd.f32 %v203, %v207
      %s209 = sadd.s32 %s162, 10
      %s210 = sld [smem:[#allocation3 + %s209]]
      %v211 = vstv %s210
      %v212 = vmul.f32 %v211, %v159
      %v213 = vadd.f32 %v208, %v212
      %s214 = sadd.s32 %s162, 11
      %s215 = sld [smem:[#allocation3 + %s214]]
      %v216 = vstv %s215
      %v217 = vmul.f32 %v216, %v161
      %v218 = vadd.f32 %v213, %v217
      %v219 = vmax.f32 %v218, 0.0001
      %v220 = vrcp.pop %v219
      %v221 = vmul.f32 %v180, %v220
      %v222 = vsub.f32 %v221, 1.0
      %223 = vst [vmem:[%s154] sm:$0x3] %v222
      %v224 = vmul.f32 %v199, %v220
      %v225 = vsub.f32 %v224, 1.0
      %s226 = scalar_lea.vmem %s154, 2
      %227 = vst [vmem:[%s226] sm:$0x3] %v225
      %p228 = scmp.lt.s32.totalorder %s23, 1
      %s229 = scalar_select %p228, %s23, 1
      %p230 = scmp.lt.s32.totalorder %s24, 0
      %s231 = scalar_select %p230, %s24, 0
      %s232 = smul.addr %s229, 2
      %s233 = sadd.s32 %s231, %s232
      %s234 = smul.addr %s233, 2
      %s235 = scalar_lea.vmem %s2, %s234
      // Predicated region
      $region25: #{project3d.1} parent=23 // pred_check
        %p236 = pneg %p79
      $region26: #{project3d.1} parent=23 // pred_check_branch
        %238 = sbr.rel (%p236) target = $region28
      $region27: #{project3d.1} parent=23 // pred_region
        _
      $region28: #{project3d.1} parent=23 // pred_fallthru
        _
    $region24: #{project3d.1} parent=5 // pred_fallthru
      _
    %p239 = scmp.le.s32.totalorder 2, %s14
    // Predicated region
    $region29: #{project3d.1} parent=5 // pred_check
      %p240 = pneg %p239
    $region30: #{project3d.1} parent=5 // pred_check_branch
      %242 = sbr.rel (%p240) target = $region32
    $region31: #{project3d.1} parent=5 // pred_region
      %s243 = ssub.s32 %s14, 2
      // Predicated region
      $region33: #{project3d.1} parent=31 // pred_check
        %p244 = pneg %p85
      $region34: #{project3d.1} parent=31 // pred_check_branch
        %246 = sbr.rel (%p244) target = $region36
      $region35: #{project3d.1} parent=31 // pred_region
        %p247 = scmp.lt.s32.totalorder %s25, 1
        %s248 = scalar_select %p247, %s25, 1
        %p249 = scmp.lt.s32.totalorder %s26, 0
        %s250 = scalar_select %p249, %s26, 0
        %s251 = smul.addr %s248, 2
        %s252 = sadd.s32 %s250, %s251
        %s253 = smul.addr %s252, 2
        %s254 = scalar_lea.vmem %s2, %s253
      $region36: #{project3d.1} parent=31 // pred_fallthru
        _
    $region32: #{project3d.1} parent=5 // pred_fallthru
      _
  $region6: #{project3d.1} parent=0 // loop_footer
    %s18 = sadd.s32 1, %s14
  $region7: #{project3d.1} parent=0 // loop_footer_branch
    %13 = sbr.rel target = $region3
  $region8: #{project3d.1} parent=0 // loop_exit
    _

</llo_original>
